<compile_context>
chip_gen: v5e
topology: v5e:2x2
jax: 0.10.0
libtpu: 0.0.40
codegen_flags: <defaults>
</compile_context>

<pallas_src>
import functools

import jax
import jax.numpy as jnp
from jax.experimental import pallas as pl
from jax.experimental.pallas import tpu as pltpu


def _round_up(x: int, m: int) -> int:
    return (x + m - 1) // m * m


def bert_self_output_kernel(x_ref, res_ref, w_ref, b_ref, g_ref, beta_ref,
                            o_ref, *, eps: float, hidden: int):
    # x_ref/res_ref: (TM, H); w_ref: (H, H) pre-transposed to (in, out);
    # b_ref/g_ref/beta_ref: (1, H) already in f32.

    # Dense: x @ W^T. Operands stay in their native dtype (bf16 MXU fast path
    # when inputs are bf16); accumulate in f32.
    y = jnp.dot(x_ref[...], w_ref[...], preferred_element_type=jnp.float32)

    # Dropout is identity in eval/inference mode.
    # TODO(synk): training-mode dropout would need pltpu.prng_seed/prng_random_bits masking here.

    # Bias + residual in f32.
    z = y + b_ref[...] + res_ref[...].astype(jnp.float32)

    # LayerNorm over the hidden axis — single pass over z:
    #   mean = E[z], var = E[z^2] - mean^2 (clamped >= 0 against cancellation)
    inv_h = jnp.float32(1.0 / hidden)
    s1 = jnp.sum(z, axis=-1, keepdims=True)
    s2 = jnp.sum(z * z, axis=-1, keepdims=True)
    mean = s1 * inv_h
    var = jnp.maximum(s2 * inv_h - mean * mean, 0.0)
    norm = (z - mean) * jax.lax.rsqrt(var + eps)
    out = norm * g_ref[...] + beta_ref[...]

    o_ref[...] = out.astype(o_ref.dtype)


def _pick_row_tile(rows: int, H: int, act_itemsize: int, w_bytes: int,
                   max_tile: int) -> int:
    """Largest row tile (multiple of 8, <= max_tile) fitting a VMEM budget."""
    # ~40 MiB working budget minus the (double-buffered) resident weight.
    budget = (40 << 20) - 2 * w_bytes
    # Per row: double-buffered x/res/out tiles + f32 epilogue temporaries.
    per_row = 2 * 3 * H * act_itemsize + 6 * H * 4
    tm_fit = max(8, (budget // max(per_row, 1)) // 8 * 8)
    tm = min(max_tile, tm_fit, _round_up(rows, 8))
    return max(8, int(tm))


def bert_self_output(hidden_states, input_tensor, weight, bias, gamma, beta,
                     *, eps=1e-12, max_row_tile=512):
    """hidden_states, input_tensor: (B, S, H); weight: (H_out, H_in) as torch."""
    B, S, H = hidden_states.shape
    rows = B * S

    x2d = hidden_states.reshape(rows, H)
    r2d = input_tensor.reshape(rows, H)
    w_t = weight.T                                   # (H_in, H_out): kernel does x @ w_t
    # Grid-invariant params: reshape and pre-cast to the f32 epilogue dtype once.
    b2d = bias.reshape(1, H).astype(jnp.float32)
    g2d = gamma.reshape(1, H).astype(jnp.float32)
    beta2d = beta.reshape(1, H).astype(jnp.float32)

    w_bytes = H * H * w_t.dtype.itemsize
    tm = _pick_row_tile(rows, H, x2d.dtype.itemsize, w_bytes, max_row_tile)

    padded_rows = _round_up(rows, tm)
    if padded_rows != rows:
        pad = padded_rows - rows
        x2d = jnp.pad(x2d, ((0, pad), (0, 0)))
        r2d = jnp.pad(r2d, ((0, pad), (0, 0)))

    grid = (padded_rows // tm,)

    act_bytes = tm * H * x2d.dtype.itemsize
    # Budget: resident weight (x2 for double-buffer slots), double-buffered
    # x/res/out tiles, f32 epilogue temporaries, plus headroom. Clamp to
    # [32 MiB, 64 MiB] so we stay within v7x's 64 MiB physical VMEM.
    vmem_bytes = 2 * w_bytes + 2 * 3 * act_bytes + 4 * tm * H * 4 + (4 << 20)
    vmem_bytes = int(max(32 << 20, min(vmem_bytes, 64 << 20)))

    cost = pl.CostEstimate(
        flops=2 * padded_rows * H * H,
        transcendentals=padded_rows,      # one rsqrt per row
        bytes_accessed=(3 * padded_rows * H * x2d.dtype.itemsize
                        + w_bytes + 3 * H * 4),
    )

    kernel = functools.partial(bert_self_output_kernel, eps=eps, hidden=H)

    out = pl.pallas_call(
        kernel,
        out_shape=jax.ShapeDtypeStruct((padded_rows, H), hidden_states.dtype),
        grid_spec=pltpu.PrefetchScalarGridSpec(
            num_scalar_prefetch=0,
            grid=grid,
            in_specs=[
                pl.BlockSpec((tm, H), lambda i: (i, 0)),   # x tile
                pl.BlockSpec((tm, H), lambda i: (i, 0)),   # residual tile
                pl.BlockSpec((H, H), lambda i: (0, 0)),    # weight (resident)
                pl.BlockSpec((1, H), lambda i: (0, 0)),    # bias   (f32)
                pl.BlockSpec((1, H), lambda i: (0, 0)),    # gamma  (f32)
                pl.BlockSpec((1, H), lambda i: (0, 0)),    # beta   (f32)
            ],
            out_specs=pl.BlockSpec((tm, H), lambda i: (i, 0)),
        ),
        compiler_params=pltpu.CompilerParams(
            dimension_semantics=("parallel",),
            vmem_limit_bytes=vmem_bytes),
        cost_estimate=cost,
    )(x2d, r2d, w_t, b2d, g2d, beta2d)

    if padded_rows != rows:
        out = out[:rows]
    return out.reshape(B, S, H)


def _reference(hidden_states, input_tensor, weight, bias, gamma, beta, eps=1e-12):
    y = jnp.einsum("bsh,oh->bso", hidden_states, weight) + bias
    z = y + input_tensor
    mean = jnp.mean(z, axis=-1, keepdims=True)
    var = jnp.mean((z - mean) ** 2, axis=-1, keepdims=True)
    return (z - mean) * jax.lax.rsqrt(var + eps) * gamma + beta


if __name__ == "__main__":
    B, S, H = 2, 8, 32
    key = jax.random.PRNGKey(0)
    k1, k2, k3, k4 = jax.random.split(key, 4)

    hidden_states = jax.random.normal(k1, (B, S, H), dtype=jnp.float32)
    input_tensor = jax.random.normal(k2, (B, S, H), dtype=jnp.float32)

    # Parameter shapes match nn.Linear(H, H) / nn.LayerNorm(H).
    weight = jax.random.normal(k3, (H, H), dtype=jnp.float32) * 0.02   # (out, in)
    bias = jax.random.normal(k4, (H,), dtype=jnp.float32) * 0.02
    gamma = jnp.ones((H,), dtype=jnp.float32)
    beta = jnp.zeros((H,), dtype=jnp.float32)

    out = bert_self_output(hidden_states, input_tensor, weight, bias, gamma, beta)
    out = jax.block_until_ready(out)

    ref = _reference(hidden_states, input_tensor, weight, bias, gamma, beta)
    assert out.shape == (B, S, H)
    assert jnp.allclose(out, ref, atol=1e-4, rtol=1e-4), "mismatch vs reference"

    print("KERNEL_OK")
</pallas_src>

<mosaic_0001>
module attributes {stable_mosaic.version = 11 : i64} {
  func.func @bert_self_output_kernel(%arg0: i32, %arg1: memref<16x32xf32, #tpu.memory_space<vmem>>, %arg2: memref<16x32xf32, #tpu.memory_space<vmem>>, %arg3: memref<32x32xf32, #tpu.memory_space<vmem>>, %arg4: memref<1x32xf32, #tpu.memory_space<vmem>>, %arg5: memref<1x32xf32, #tpu.memory_space<vmem>>, %arg6: memref<1x32xf32, #tpu.memory_space<vmem>>, %arg7: memref<16x32xf32, #tpu.memory_space<vmem>>) attributes {dimension_semantics = [#tpu.dimension_semantics<parallel>], iteration_bounds = array<i64: 1>, scalar_prefetch = 0 : i64, scratch_operands = 0 : i64, tpu.core_type = #tpu.core_type<tc>, window_params = [{transform_indices = @transform_0, window_bounds = array<i64: 16, 32>}, {transform_indices = @transform_1, window_bounds = array<i64: 16, 32>}, {pipeline_mode = #tpu.pipeline_mode<synchronous>, transform_indices = @transform_2, window_bounds = array<i64: 32, 32>}, {pipeline_mode = #tpu.pipeline_mode<synchronous>, transform_indices = @transform_3, window_bounds = array<i64: 1, 32>}, {pipeline_mode = #tpu.pipeline_mode<synchronous>, transform_indices = @transform_4, window_bounds = array<i64: 1, 32>}, {pipeline_mode = #tpu.pipeline_mode<synchronous>, transform_indices = @transform_5, window_bounds = array<i64: 1, 32>}, {transform_indices = @transform_6, window_bounds = array<i64: 16, 32>}]} {
    %c0 = arith.constant 0 : index
    %c0_0 = arith.constant 0 : index
    %0 = vector.load %arg1[%c0, %c0_0] : memref<16x32xf32, #tpu.memory_space<vmem>>, vector<16x32xf32>
    %c0_1 = arith.constant 0 : index
    %c0_2 = arith.constant 0 : index
    %1 = vector.load %arg3[%c0_1, %c0_2] : memref<32x32xf32, #tpu.memory_space<vmem>>, vector<32x32xf32>
    %cst = arith.constant dense<0.000000e+00> : vector<16x32xf32>
    %2 = tpu.matmul %0, %1, %cst {dimension_numbers = #tpu.dot_dimension_numbers<[1], [0], [0], [1], [0, 0, 1, 1], [], []>} : vector<16x32xf32>, vector<32x32xf32>, vector<16x32xf32> -> vector<16x32xf32>
    %c0_3 = arith.constant 0 : index
    %c0_4 = arith.constant 0 : index
    %3 = vector.load %arg4[%c0_3, %c0_4] : memref<1x32xf32, #tpu.memory_space<vmem>>, vector<1x32xf32>
    %4 = vector.broadcast %3 : vector<1x32xf32> to vector<16x32xf32>
    %5 = arith.addf %2, %4 : vector<16x32xf32>
    %c0_5 = arith.constant 0 : index
    %c0_6 = arith.constant 0 : index
    %6 = vector.load %arg2[%c0_5, %c0_6] : memref<16x32xf32, #tpu.memory_space<vmem>>, vector<16x32xf32>
    %7 = arith.addf %5, %6 : vector<16x32xf32>
    %cst_7 = arith.constant dense<0.000000e+00> : vector<16xf32>
    %8 = vector.multi_reduction <add>, %7, %cst_7 [1] : vector<16x32xf32> to vector<16xf32>
    %9 = vector.shape_cast %8 : vector<16xf32> to vector<16x1xf32>
    %10 = arith.mulf %7, %7 : vector<16x32xf32>
    %cst_8 = arith.constant dense<0.000000e+00> : vector<16xf32>
    %11 = vector.multi_reduction <add>, %10, %cst_8 [1] : vector<16x32xf32> to vector<16xf32>
    %12 = vector.shape_cast %11 : vector<16xf32> to vector<16x1xf32>
    %cst_9 = arith.constant 3.125000e-02 : f32
    %13 = vector.broadcast %cst_9 : f32 to vector<16x1xf32>
    %14 = arith.mulf %9, %13 : vector<16x1xf32>
    %cst_10 = arith.constant 3.125000e-02 : f32
    %15 = vector.broadcast %cst_10 : f32 to vector<16x1xf32>
    %16 = arith.mulf %12, %15 : vector<16x1xf32>
    %17 = arith.mulf %14, %14 : vector<16x1xf32>
    %18 = arith.subf %16, %17 : vector<16x1xf32>
    %cst_11 = arith.constant 0.000000e+00 : f32
    %19 = vector.broadcast %cst_11 : f32 to vector<16x1xf32>
    %20 = arith.maximumf %18, %19 : vector<16x1xf32>
    %21 = vector.broadcast %14 : vector<16x1xf32> to vector<16x32xf32>
    %22 = arith.subf %7, %21 : vector<16x32xf32>
    %cst_12 = arith.constant 9.99999996E-13 : f32
    %23 = vector.broadcast %cst_12 : f32 to vector<16x1xf32>
    %24 = arith.addf %20, %23 : vector<16x1xf32>
    %25 = math.rsqrt %24 : vector<16x1xf32>
    %26 = vector.broadcast %25 : vector<16x1xf32> to vector<16x32xf32>
    %27 = arith.mulf %22, %26 : vector<16x32xf32>
    %c0_13 = arith.constant 0 : index
    %c0_14 = arith.constant 0 : index
    %28 = vector.load %arg5[%c0_13, %c0_14] : memref<1x32xf32, #tpu.memory_space<vmem>>, vector<1x32xf32>
    %29 = vector.broadcast %28 : vector<1x32xf32> to vector<16x32xf32>
    %30 = arith.mulf %27, %29 : vector<16x32xf32>
    %c0_15 = arith.constant 0 : index
    %c0_16 = arith.constant 0 : index
    %31 = vector.load %arg6[%c0_15, %c0_16] : memref<1x32xf32, #tpu.memory_space<vmem>>, vector<1x32xf32>
    %32 = vector.broadcast %31 : vector<1x32xf32> to vector<16x32xf32>
    %33 = arith.addf %30, %32 : vector<16x32xf32>
    %c0_17 = arith.constant 0 : index
    %c0_18 = arith.constant 0 : index
    %34 = vector.load %arg7[%c0_17, %c0_18] : memref<16x32xf32, #tpu.memory_space<vmem>>, vector<16x32xf32>
    tpu.vector_store %arg7[%c0_17, %c0_18], %33 {strides = array<i32>} : memref<16x32xf32, #tpu.memory_space<vmem>>, vector<16x32xf32>,
    return
  }
  func.func @transform_0(%arg0: i32) -> (i32, i32) {
    %c0_i32 = arith.constant 0 : i32
    %c0_i32_0 = arith.constant 0 : i32
    return %arg0, %c0_i32 : i32, i32
  }
  func.func @transform_1(%arg0: i32) -> (i32, i32) {
    %c0_i32 = arith.constant 0 : i32
    %c0_i32_0 = arith.constant 0 : i32
    return %arg0, %c0_i32 : i32, i32
  }
  func.func @transform_2(%arg0: i32) -> (i32, i32) {
    %c0_i32 = arith.constant 0 : i32
    %c0_i32_0 = arith.constant 0 : i32
    %c0_i32_1 = arith.constant 0 : i32
    return %c0_i32, %c0_i32_0 : i32, i32
  }
  func.func @transform_3(%arg0: i32) -> (i32, i32) {
    %c0_i32 = arith.constant 0 : i32
    %c0_i32_0 = arith.constant 0 : i32
    %c0_i32_1 = arith.constant 0 : i32
    return %c0_i32, %c0_i32_0 : i32, i32
  }
  func.func @transform_4(%arg0: i32) -> (i32, i32) {
    %c0_i32 = arith.constant 0 : i32
    %c0_i32_0 = arith.constant 0 : i32
    %c0_i32_1 = arith.constant 0 : i32
    return %c0_i32, %c0_i32_0 : i32, i32
  }
  func.func @transform_5(%arg0: i32) -> (i32, i32) {
    %c0_i32 = arith.constant 0 : i32
    %c0_i32_0 = arith.constant 0 : i32
    %c0_i32_1 = arith.constant 0 : i32
    return %c0_i32, %c0_i32_0 : i32, i32
  }
  func.func @transform_6(%arg0: i32) -> (i32, i32) {
    %c0_i32 = arith.constant 0 : i32
    %c0_i32_0 = arith.constant 0 : i32
    return %arg0, %c0_i32 : i32, i32
  }
}

</mosaic_0001>

<llo_original>
// kernel: tpu_custom_call.1
$region0: #{tpu_custom_call.1}
  #allocation0 [shape = 'u32[]', space=smem, size = 0x4, offset = 0x4, fixed_abs, tag = 'smem constant byte address 0x4 - core index']
  #allocation1 [shape = 'u32[72,128]{1,0:T(1,128)}', space=vmem, size = 0x9000, scoped, tag = 'internal scratch']
  %s0 = inlined_call_operand.hbm [shape: f32[16,32], index: 0, kind: input, shape index: {}]
  %s1 = inlined_call_operand.hbm [shape: f32[16,32], index: 1, kind: input, shape index: {}]
  %s2 = inlined_call_operand.hbm [shape: f32[32,32], index: 2, kind: input, shape index: {}]
  %s3 = inlined_call_operand.vmem [shape: f32[1,32], index: 3, kind: input, shape index: {}]
  %s4 = inlined_call_operand.vmem [shape: f32[1,32], index: 4, kind: input, shape index: {}]
  %s5 = inlined_call_operand.vmem [shape: f32[1,32], index: 5, kind: input, shape index: {}]
  %s6 = inlined_call_operand.hbm [shape: f32[16,32], index: 6, kind: output, shape index: {}]
  %s7 = sld [smem:[#allocation0]]
  $region46: #{tpu_custom_call.1} parent=0
    _
  %s9 = ssub.s32 1, %s7
  %s10 = scalar_select 0, %s9, %s7
  $region1: #{tpu_custom_call.1} parent=0
    #allocation2 [shape = 'u8[8192]{0}', space=vmem, size = 0x2000, scoped, tag = 'input window, operand 0, single buffered']
    #allocation3 [shape = 's32[1]{0}', space=sflag, size = 0x4, scoped, tag = 'scoped memory for tpu_custom_call.1']
    #allocation4 [shape = 's32[1]{0}', space=sflag, size = 0x4, scoped, tag = 'scoped memory for tpu_custom_call.1']
    #allocation5 [shape = 'u8[8192]{0}', space=vmem, size = 0x2000, scoped, tag = 'input window, operand 1, single buffered']
    #allocation6 [shape = 's32[1]{0}', space=sflag, size = 0x4, scoped, tag = 'scoped memory for tpu_custom_call.1']
    #allocation7 [shape = 'u8[16384]{0}', space=vmem, size = 0x4000, scoped, tag = 'input window, operand 2, single buffered']
    #allocation8 [shape = 'u8[8192]{0}', space=vmem, size = 0x2000, scoped, tag = 'output window, operand 0, single buffered']
    %11 = vsyncpa [#allocation3], 0
    %12 = vsyncpa [#allocation6], 0
    %13 = vsyncpa [#allocation4], 0
    // Predicated region
    $region2: #{tpu_custom_call.1} parent=1 // pred_check
      _
    $region3: #{tpu_custom_call.1} parent=1 // pred_check_branch
      %15 = sbr.rel (0) target = $region5
    $region4: #{tpu_custom_call.1} parent=1 // pred_region
      %17 = vsyncadd [#allocation3], 0
      %s18 = sshll.u32 %s0, 4
      %s19 = int_to_ptr.hbm [resolvable:$true] %s18
      %s20 = sshll.u32 [#allocation2], 4
      %s21 = int_to_ptr.vmem [resolvable:$true] %s20
      %26 = dma.hbm_to_vmem [thread:$0]  %s19, 256, %s21, [#allocation3], 128, 128, 8
    $region5: #{tpu_custom_call.1} parent=1 // pred_fallthru
      _
    // Predicated region
    $region6: #{tpu_custom_call.1} parent=1 // pred_check
      _
    $region7: #{tpu_custom_call.1} parent=1 // pred_check_branch
      %28 = sbr.rel (0) target = $region9
    $region8: #{tpu_custom_call.1} parent=1 // pred_region
      %30 = vsyncadd [#allocation6], 0
      %s31 = sshll.u32 %s1, 4
      %s32 = int_to_ptr.hbm [resolvable:$true] %s31
      %s33 = sshll.u32 [#allocation5], 4
      %s34 = int_to_ptr.vmem [resolvable:$true] %s33
      %39 = dma.hbm_to_vmem [thread:$0]  %s32, 256, %s34, [#allocation6], 128, 128, 8
    $region9: #{tpu_custom_call.1} parent=1 // pred_fallthru
      _
    // Predicated region
    $region10: #{tpu_custom_call.1} parent=1 // pred_check
      _
    $region11: #{tpu_custom_call.1} parent=1 // pred_check_branch
      %41 = sbr.rel (0) target = $region13
    $region12: #{tpu_custom_call.1} parent=1 // pred_region
      %43 = vsyncadd [#allocation6], 0
      %s44 = sshll.u32 %s2, 4
      %s45 = int_to_ptr.hbm [resolvable:$true] %s44
      %s46 = sshll.u32 [#allocation7], 4
      %s47 = int_to_ptr.vmem [resolvable:$true] %s46
      %52 = dma.hbm_to_vmem [thread:$0]  %s45, 512, %s47, [#allocation6], 128, 128, 8
    $region13: #{tpu_custom_call.1} parent=1 // pred_fallthru
      _
    // Predicated region
    $region14: #{tpu_custom_call.1} parent=1 // pred_check
      _
    $region15: #{tpu_custom_call.1} parent=1 // pred_check_branch
      %54 = sbr.rel (0) target = $region17
    $region16: #{tpu_custom_call.1} parent=1 // pred_region
      _
    $region17: #{tpu_custom_call.1} parent=1 // pred_fallthru
      _
    // Predicated region
    $region18: #{tpu_custom_call.1} parent=1 // pred_check
      _
    $region19: #{tpu_custom_call.1} parent=1 // pred_check_branch
      %56 = sbr.rel (0) target = $region21
    $region20: #{tpu_custom_call.1} parent=1 // pred_region
      _
    $region21: #{tpu_custom_call.1} parent=1 // pred_fallthru
      _
    // Predicated region
    $region22: #{tpu_custom_call.1} parent=1 // pred_check
      _
    $region23: #{tpu_custom_call.1} parent=1 // pred_check_branch
      %58 = sbr.rel (0) target = $region25
    $region24: #{tpu_custom_call.1} parent=1 // pred_region
      _
    $region25: #{tpu_custom_call.1} parent=1 // pred_fallthru
      _
    // Predicated region
    $region26: #{tpu_custom_call.1} parent=1 // pred_check
      _
    $region27: #{tpu_custom_call.1} parent=1 // pred_check_branch
      %60 = sbr.rel (0) target = $region29
    $region28: #{tpu_custom_call.1} parent=1 // pred_region
      %62 = dma.done [#allocation3], 256
    $region29: #{tpu_custom_call.1} parent=1 // pred_fallthru
      _
    // Predicated region
    $region30: #{tpu_custom_call.1} parent=1 // pred_check
      _
    $region31: #{tpu_custom_call.1} parent=1 // pred_check_branch
      %64 = sbr.rel (0) target = $region33
    $region32: #{tpu_custom_call.1} parent=1 // pred_region
      %66 = dma.done [#allocation6], 256
    $region33: #{tpu_custom_call.1} parent=1 // pred_fallthru
      _
    // Predicated region
    $region34: #{tpu_custom_call.1} parent=1 // pred_check
      _
    $region35: #{tpu_custom_call.1} parent=1 // pred_check_branch
      %68 = sbr.rel (0) target = $region37
    $region36: #{tpu_custom_call.1} parent=1 // pred_region
      %70 = dma.done [#allocation6], 512
    $region37: #{tpu_custom_call.1} parent=1 // pred_fallthru
      _
    %v71 = vld [vmem:[#allocation2] sm:$0xff]
    %v72 = vld [vmem:[#allocation2 + $0x8] sm:$0xff]
    %v73 = vld [vmem:[#allocation7] sm:$0xff]
    %v74 = vld [vmem:[#allocation7 + $0x8] sm:$0xff]
    %v75 = vld [vmem:[#allocation7 + $0x10] sm:$0xff]
    %v76 = vld [vmem:[#allocation7 + $0x18] sm:$0xff]
    %v77 = vld [vmem:[%s3] sm:$0x1]
    %v79 = vperm.slane %v77, 0
    %vm81 = vcmask 261120
    %v83 = vsel %vm81, %v71, 0
    %v86 = vsel %vm81, %v72, 0
    %88 = vmatpush.msra.mxu0 0.0
    %89 = vmatpush.msra.mxu0 0.0
    %90 = vmatpush.msra.mxu0 0.0
    %91 = vmatpush.msra.mxu0 0.0
    %92 = vmatpush.msra.mxu0 0.0
    %93 = vmatpush.msra.mxu0 0.0
    %94 = vmatpush.msra.mxu0 0.0
    %95 = vmatpush.msra.mxu0 0.0
    %96 = vmatpush.msra.mxu0 0.0
    %97 = vmatpush.msra.mxu0 0.0
    %98 = vmatpush.msra.mxu0 0.0
    %99 = vmatpush.msra.mxu0 0.0
    %100 = vmatpush.msra.mxu0 %v76
    %101 = vmatpush.msra.mxu0 %v75
    %102 = vmatpush.msra.mxu0 %v74
    %103 = vmatpush.msra.mxu0 %v73
    %104 = vmatmul.f32.gmra.mxu0 %v83
    %v105 = vpop.f32.mrf.mxu0
    %v106 = vadd.f32 %v79, %v105
    %107 = vmatmul.f32.gmra.mxu0 %v86
    %v108 = vpop.f32.mrf.mxu0
    %v109 = vadd.f32 %v79, %v108
    %110 = vdwg.mxu0
    %v111 = vld [vmem:[#allocation5] sm:$0xff]
    %v112 = vld [vmem:[#allocation5 + $0x8] sm:$0xff]
    %v113 = vadd.f32 %v106, %v111
    %v114 = vadd.f32 %v109, %v112
    %v115 = vsel %vm81, %v113, 0.0
    %116 = vadd.xlane.f32.xlu0 %v115
    %v117 = vpop.xlane.xlu0 %116
    %v118 = vsel %vm81, %v114, 0.0
    %119 = vadd.xlane.f32.xlu0 %v118
    %v120 = vpop.xlane.xlu0 %119
    %v121 = vmul.f32 %v113, %v113
    %v122 = vmul.f32 %v114, %v114
    %v123 = vsel %vm81, %v121, 0.0
    %124 = vadd.xlane.f32.xlu0 %v123
    %v125 = vpop.xlane.xlu0 %124
    %v126 = vsel %vm81, %v122, 0.0
    %127 = vadd.xlane.f32.xlu0 %v126
    %v128 = vpop.xlane.xlu0 %127
    %v129 = vmul.f32 %v117, 0.03125
    %v130 = vmul.f32 %v120, 0.03125
    %v131 = vmul.f32 %v125, 0.03125
    %v132 = vmul.f32 %v128, 0.03125
    %v133 = vmul.f32 %v129, %v129
    %v134 = vmul.f32 %v130, %v130
    %v135 = vsub.f32 %v131, %v133
    %v136 = vsub.f32 %v132, %v134
    %v137 = vmax.f32 %v135, 0.0
    %v138 = vmax.f32 %v136, 0.0
    %v139 = vsub.f32 %v113, %v129
    %v140 = vsub.f32 %v114, %v130
    %v141 = vadd.f32 %v137, 1e-12
    %v142 = vadd.f32 %v138, 1e-12
    %v143 = vrsqrt.pop %v141
    %v144 = vmul.f32 %v143, %v141
    %v145 = vmul.f32 %v144, %v143
    %v146 = vmul.f32 0.5, %v145
    %v147 = vsub.f32 1.5, %v146
    %v148 = vmul.f32 %v143, %v147
    %vm149 = vweird.f32 %v141
    %vm150 = vweird.f32 %v143
    %vm151 = vmor %vm149, %vm150
    %v152 = vsel %vm151, %v143, %v148
    %v153 = vrsqrt.pop %v142
    %v154 = vmul.f32 %v153, %v142
    %v155 = vmul.f32 %v154, %v153
    %v156 = vmul.f32 0.5, %v155
    %v157 = vsub.f32 1.5, %v156
    %v158 = vmul.f32 %v153, %v157
    %vm159 = vweird.f32 %v142
    %vm160 = vweird.f32 %v153
    %vm161 = vmor %vm159, %vm160
    %v162 = vsel %vm161, %v153, %v158
    %v163 = vmul.f32 %v139, %v152
    %v164 = vmul.f32 %v140, %v162
    %v165 = vld [vmem:[%s4] sm:$0x1]
    %v167 = vperm.slane %v165, 0
    %v169 = vmul.f32 %v163, %v167
    %v170 = vmul.f32 %v164, %v167
    %v171 = vld [vmem:[%s5] sm:$0x1]
    %v173 = vperm.slane %v171, 0
    %v175 = vadd.f32 %v169, %v173
    %v176 = vadd.f32 %v170, %v173
    %177 = vst.msk [vmem:[#allocation8] sm:$0xff] %vm81, %v175
    %178 = vst.msk [vmem:[#allocation8 + $0x8] sm:$0xff] %vm81, %v176
    // Predicated region
    $region38: #{tpu_custom_call.1} parent=1 // pred_check
      _
    $region39: #{tpu_custom_call.1} parent=1 // pred_check_branch
      %180 = sbr.rel (0) target = $region41
    $region40: #{tpu_custom_call.1} parent=1 // pred_region
      %182 = vsyncadd [#allocation4], 0
      %s183 = sshll.u32 [#allocation8], 4
      %s184 = int_to_ptr.vmem [resolvable:$true] %s183
      %s185 = sshll.u32 %s6, 4
      %s186 = int_to_ptr.hbm [resolvable:$true] %s185
      %191 = dma.vmem_to_hbm [thread:$0]  %s184, 256, %s186, [#allocation4], 128, 128, 8
    $region41: #{tpu_custom_call.1} parent=1 // pred_fallthru
      _
    // Predicated region
    $region42: #{tpu_custom_call.1} parent=1 // pred_check
      _
    $region43: #{tpu_custom_call.1} parent=1 // pred_check_branch
      %193 = sbr.rel (0) target = $region45
    $region44: #{tpu_custom_call.1} parent=1 // pred_region
      %195 = dma.done [#allocation4], 256
    $region45: #{tpu_custom_call.1} parent=1 // pred_fallthru
      _
    %196 = vsyncpa [#allocation3], 1
    %197 = vsyncpa [#allocation6], 1
    %198 = vsyncpa [#allocation4], 1

</llo_original>
